<compile_context>
chip_gen: v5e
topology: v5e:2x2
jax: 0.10.0
libtpu: 0.0.40
codegen_flags: <defaults>
</compile_context>

<pallas_src>
import jax
import jax.numpy as jnp
from jax.experimental import pallas as pl
from jax.experimental.pallas import tpu as pltpu

HID_PAD = 128  # hidden dim (100) zero-padded to one full lane tile


def mlp_kernel(x_ref, w1t_ref, b1_ref, w2_ref, b2_ref, o_ref):
    # x:   (B, 10)      VMEM
    # w1t: (10, 128)    VMEM  (pre-transposed + zero-padded once in wrapper)
    # b1:  (1, 128)     VMEM  (zero-padded)
    # w2:  (1, 128)     VMEM  (zero-padded)
    # b2:  (1,)         SMEM scalar
    # o:   (B, 1)       VMEM
    x = x_ref[...]

    # hidden = relu(x @ W1^T + b1) -> (B, 128); single MXU push, lane-dense RHS.
    h = jnp.dot(x, w1t_ref[...], preferred_element_type=jnp.float32)
    h = jnp.maximum(h + b1_ref[...], 0.0)            # VPU, full unmasked vregs

    # out layer (N=1): VPU multiply + XLU lane reduce (no N=1 MXU matmul).
    # Padded lanes are exactly zero (zero weights * relu(0)=0), so no masking.
    y = jnp.sum(h * w2_ref[...], axis=-1, keepdims=True)   # (B, 1)
    o_ref[...] = (y + b2_ref[0]).astype(o_ref.dtype)        # SMEM scalar add


def prepare_params(w1, b1, w2, b2):
    """One-time prep of PyTorch-layout params (W[out,in], b[out]) for the kernel.

    Returns (w1t_pad, b1_pad, w2_pad, b2_scalar) in kernel-ready layout:
      w1t: (in, HID_PAD) zero-padded, b1/w2: (1, HID_PAD) zero-padded, b2: (1,).
    Zero padding keeps the math exact (relu(0*x+0)=0, 0-weight lanes sum to 0).
    """
    hid_f, in_f = w1.shape
    w1t = jnp.zeros((in_f, HID_PAD), jnp.float32).at[:, :hid_f].set(w1.T)
    b1p = jnp.zeros((1, HID_PAD), jnp.float32).at[:, :hid_f].set(b1)
    w2p = jnp.zeros((1, HID_PAD), jnp.float32).at[:, :hid_f].set(w2[0])
    b2s = b2.reshape(1).astype(jnp.float32)
    return w1t, b1p, w2p, b2s


@jax.jit
def mlp_forward(x, w1t, b1p, w2p, b2s):
    """x:(B,10), prepped params -> (B,1). Single pallas_call, no extra dispatches."""
    B = x.shape[0]
    vmem = pl.BlockSpec(memory_space=pltpu.MemorySpace.VMEM)
    smem = pl.BlockSpec(memory_space=pltpu.MemorySpace.SMEM)

    return pl.pallas_call(
        mlp_kernel,
        out_shape=jax.ShapeDtypeStruct((B, 1), jnp.float32),
        in_specs=[vmem, vmem, vmem, vmem, smem],
        out_specs=vmem,
    )(x, w1t, b1p, w2p, b2s)


if __name__ == "__main__":
    key = jax.random.PRNGKey(0)
    kx, k1, kb1, k2, kb2 = jax.random.split(key, 5)

    # Input matching the reference script: X = torch.rand((10, 10))
    x = jax.random.uniform(kx, (10, 10), dtype=jnp.float32)

    # PyTorch Linear parameter shapes: W[out, in], b[out].
    in_f, hid_f, out_f = 10, 100, 1
    lim1 = 1.0 / jnp.sqrt(in_f)
    w1 = jax.random.uniform(k1, (hid_f, in_f), minval=-lim1, maxval=lim1,
                            dtype=jnp.float32)
    b1 = jax.random.uniform(kb1, (hid_f,), minval=-lim1, maxval=lim1,
                            dtype=jnp.float32)
    lim2 = 1.0 / jnp.sqrt(hid_f)
    w2 = jax.random.uniform(k2, (out_f, hid_f), minval=-lim2, maxval=lim2,
                            dtype=jnp.float32)
    b2 = jax.random.uniform(kb2, (out_f,), minval=-lim2, maxval=lim2,
                            dtype=jnp.float32)

    # One-time weight prep (transpose / pad / reshape hoisted out of fwd path).
    params = prepare_params(w1, b1, w2, b2)
    params = jax.tree_util.tree_map(jax.block_until_ready, params)

    out = mlp_forward(x, *params)
    jax.block_until_ready(out)

    # Pure-JAX reference check (same math as the PyTorch module).
    ref = jnp.maximum(x @ w1.T + b1, 0.0) @ w2.T + b2
    assert out.shape == (10, 1)
    assert jnp.allclose(out, ref, atol=1e-5, rtol=1e-5)

    print("KERNEL_OK")
</pallas_src>

<mosaic_0001>
module attributes {stable_mosaic.version = 11 : i64} {
  func.func @mlp_kernel(%arg0: memref<10x10xf32, #tpu.memory_space<vmem>>, %arg1: memref<10x128xf32, #tpu.memory_space<vmem>>, %arg2: memref<1x128xf32, #tpu.memory_space<vmem>>, %arg3: memref<1x128xf32, #tpu.memory_space<vmem>>, %arg4: memref<1xf32, #tpu.memory_space<smem>>, %arg5: memref<10x1xf32, #tpu.memory_space<vmem>>) attributes {dimension_semantics = [], scalar_prefetch = 0 : i64, scratch_operands = 0 : i64, tpu.core_type = #tpu.core_type<tc>} {
    %c0 = arith.constant 0 : index
    %c0_0 = arith.constant 0 : index
    %0 = vector.load %arg0[%c0, %c0_0] : memref<10x10xf32, #tpu.memory_space<vmem>>, vector<10x10xf32>
    %c0_1 = arith.constant 0 : index
    %c0_2 = arith.constant 0 : index
    %1 = vector.load %arg1[%c0_1, %c0_2] : memref<10x128xf32, #tpu.memory_space<vmem>>, vector<10x128xf32>
    %cst = arith.constant dense<0.000000e+00> : vector<10x128xf32>
    %2 = tpu.matmul %0, %1, %cst {dimension_numbers = #tpu.dot_dimension_numbers<[1], [0], [0], [1], [0, 0, 1, 1], [], []>} : vector<10x10xf32>, vector<10x128xf32>, vector<10x128xf32> -> vector<10x128xf32>
    %c0_3 = arith.constant 0 : index
    %c0_4 = arith.constant 0 : index
    %3 = vector.load %arg2[%c0_3, %c0_4] : memref<1x128xf32, #tpu.memory_space<vmem>>, vector<1x128xf32>
    %4 = vector.broadcast %3 : vector<1x128xf32> to vector<10x128xf32>
    %5 = arith.addf %2, %4 : vector<10x128xf32>
    %cst_5 = arith.constant 0.000000e+00 : f32
    %6 = vector.broadcast %cst_5 : f32 to vector<10x128xf32>
    %7 = arith.maximumf %5, %6 : vector<10x128xf32>
    %c0_6 = arith.constant 0 : index
    %c0_7 = arith.constant 0 : index
    %8 = vector.load %arg3[%c0_6, %c0_7] : memref<1x128xf32, #tpu.memory_space<vmem>>, vector<1x128xf32>
    %9 = vector.broadcast %8 : vector<1x128xf32> to vector<10x128xf32>
    %10 = arith.mulf %7, %9 : vector<10x128xf32>
    %cst_8 = arith.constant dense<0.000000e+00> : vector<10xf32>
    %11 = vector.multi_reduction <add>, %10, %cst_8 [1] : vector<10x128xf32> to vector<10xf32>
    %12 = vector.shape_cast %11 : vector<10xf32> to vector<10x1xf32>
    %c0_9 = arith.constant 0 : index
    %13 = memref.load %arg4[%c0_9] : memref<1xf32, #tpu.memory_space<smem>>
    %14 = vector.broadcast %13 : f32 to vector<10x1xf32>
    %15 = arith.addf %12, %14 : vector<10x1xf32>
    %c0_10 = arith.constant 0 : index
    %c0_11 = arith.constant 0 : index
    %16 = vector.load %arg5[%c0_10, %c0_11] : memref<10x1xf32, #tpu.memory_space<vmem>>, vector<10x1xf32>
    tpu.vector_store %arg5[%c0_10, %c0_11], %15 {strides = array<i32>} : memref<10x1xf32, #tpu.memory_space<vmem>>, vector<10x1xf32>,
    return
  }
}

</mosaic_0001>

<llo_original>
// kernel: mlp_forward.1
$region0: #{mlp_forward.1}
  #allocation0 [shape = 'u32[]', space=smem, size = 0x4, offset = 0x4, fixed_abs, tag = 'smem constant byte address 0x4 - core index']
  #allocation1 [shape = 'u32[72,128]{1,0:T(1,128)}', space=vmem, size = 0x9000, scoped, tag = 'internal scratch']
  #allocation2 [shape = 'f32[1]{0:T(128)S(6)}', space=smem, size = 0x200, scoped, tag = 'scoped memory for mlp_forward.1']
  %s0 = inlined_call_operand.hbm [shape: f32[10,10], index: 0, kind: input, shape index: {}]
  %s1 = inlined_call_operand.hbm [shape: f32[10,128], index: 1, kind: input, shape index: {}]
  %s2 = inlined_call_operand.vmem [shape: f32[1,128], index: 2, kind: input, shape index: {}]
  %s3 = inlined_call_operand.vmem [shape: f32[1,128], index: 3, kind: input, shape index: {}]
  %s4 = inlined_call_operand.<no memory space> [shape: f32[1], index: 4, kind: input, shape index: {}]
  %s5 = inlined_call_operand.vmem [shape: f32[10,1], index: 5, kind: output, shape index: {}]
  %s6 = sld [smem:[#allocation0]]
  $region38: #{mlp_forward.1} parent=0
    _
  %s8 = ssub.s32 1, %s6
  %s9 = scalar_select 0, %s8, %s6
  %10 = sst [smem:[#allocation2]] %s4
  $region1: #{mlp_forward.1} parent=0
    #allocation3 [shape = 'u8[8192]{0}', space=vmem, size = 0x2000, scoped, tag = 'input window, operand 0, single buffered']
    #allocation4 [shape = 's32[1]{0}', space=sflag, size = 0x4, scoped, tag = 'scoped memory for mlp_forward.1']
    #allocation5 [shape = 'u8[8192]{0}', space=vmem, size = 0x2000, scoped, tag = 'input window, operand 1, single buffered']
    #allocation6 [shape = 's32[1]{0}', space=sflag, size = 0x4, scoped, tag = 'scoped memory for mlp_forward.1']
    %11 = vsyncpa [#allocation4], 0
    %12 = vsyncpa [#allocation6], 0
    // Predicated region
    $region2: #{mlp_forward.1} parent=1 // pred_check
      _
    $region3: #{mlp_forward.1} parent=1 // pred_check_branch
      %14 = sbr.rel (0) target = $region5
    $region4: #{mlp_forward.1} parent=1 // pred_region
      %16 = vsyncadd [#allocation4], 0
      %s17 = sshll.u32 %s0, 4
      %s18 = int_to_ptr.hbm [resolvable:$true] %s17
      %s19 = sshll.u32 [#allocation3], 4
      %s20 = int_to_ptr.vmem [resolvable:$true] %s19
      %25 = dma.hbm_to_vmem [thread:$0]  %s18, 256, %s20, [#allocation4], 128, 128, 8
    $region5: #{mlp_forward.1} parent=1 // pred_fallthru
      _
    // Predicated region
    $region6: #{mlp_forward.1} parent=1 // pred_check
      _
    $region7: #{mlp_forward.1} parent=1 // pred_check_branch
      %27 = sbr.rel (0) target = $region9
    $region8: #{mlp_forward.1} parent=1 // pred_region
      %29 = vsyncadd [#allocation6], 0
      %s30 = sshll.u32 %s1, 4
      %s31 = int_to_ptr.hbm [resolvable:$true] %s30
      %s32 = sshll.u32 [#allocation5], 4
      %s33 = int_to_ptr.vmem [resolvable:$true] %s32
      %38 = dma.hbm_to_vmem [thread:$0]  %s31, 256, %s33, [#allocation6], 128, 128, 8
    $region9: #{mlp_forward.1} parent=1 // pred_fallthru
      _
    // Predicated region
    $region10: #{mlp_forward.1} parent=1 // pred_check
      _
    $region11: #{mlp_forward.1} parent=1 // pred_check_branch
      %40 = sbr.rel (0) target = $region13
    $region12: #{mlp_forward.1} parent=1 // pred_region
      _
    $region13: #{mlp_forward.1} parent=1 // pred_fallthru
      _
    // Predicated region
    $region14: #{mlp_forward.1} parent=1 // pred_check
      _
    $region15: #{mlp_forward.1} parent=1 // pred_check_branch
      %42 = sbr.rel (0) target = $region17
    $region16: #{mlp_forward.1} parent=1 // pred_region
      _
    $region17: #{mlp_forward.1} parent=1 // pred_fallthru
      _
    // Predicated region
    $region18: #{mlp_forward.1} parent=1 // pred_check
      _
    $region19: #{mlp_forward.1} parent=1 // pred_check_branch
      %44 = sbr.rel (0) target = $region21
    $region20: #{mlp_forward.1} parent=1 // pred_region
      _
    $region21: #{mlp_forward.1} parent=1 // pred_fallthru
      _
    // Predicated region
    $region22: #{mlp_forward.1} parent=1 // pred_check
      _
    $region23: #{mlp_forward.1} parent=1 // pred_check_branch
      %46 = sbr.rel (0) target = $region25
    $region24: #{mlp_forward.1} parent=1 // pred_region
      %48 = dma.done [#allocation4], 256
    $region25: #{mlp_forward.1} parent=1 // pred_fallthru
      _
    // Predicated region
    $region26: #{mlp_forward.1} parent=1 // pred_check
      _
    $region27: #{mlp_forward.1} parent=1 // pred_check_branch
      %50 = sbr.rel (0) target = $region29
    $region28: #{mlp_forward.1} parent=1 // pred_region
      %52 = dma.done [#allocation6], 256
    $region29: #{mlp_forward.1} parent=1 // pred_fallthru
      _
    %v53 = vld [vmem:[#allocation3] sm:$0xff]
    %v54 = vld [vmem:[#allocation3 + $0x8] sm:$0x3]
    %v55 = vld [vmem:[#allocation5] sm:$0xff]
    %v56 = vld [vmem:[#allocation5 + $0x8] sm:$0x3]
    %v57 = vld [vmem:[%s2] sm:$0x1]
    %v59 = vperm.slane %v57, 0
    %vm61 = vcmask 80896
    %v63 = vsel %vm61, %v53, 0
    %v66 = vsel %vm61, %v54, 0
    %vm68 = vcmask 1041408
    %v70 = vsel %vm68, %v56, 0
    %72 = vmatpush.msra.mxu0 0.0
    %73 = vmatpush.msra.mxu0 0.0
    %74 = vmatpush.msra.mxu0 0.0
    %75 = vmatpush.msra.mxu0 0.0
    %76 = vmatpush.msra.mxu0 0.0
    %77 = vmatpush.msra.mxu0 0.0
    %78 = vmatpush.msra.mxu0 0.0
    %79 = vmatpush.msra.mxu0 0.0
    %80 = vmatpush.msra.mxu0 0.0
    %81 = vmatpush.msra.mxu0 0.0
    %82 = vmatpush.msra.mxu0 0.0
    %83 = vmatpush.msra.mxu0 0.0
    %84 = vmatpush.msra.mxu0 0.0
    %85 = vmatpush.msra.mxu0 0.0
    %86 = vmatpush.msra.mxu0 %v70
    %87 = vmatpush.msra.mxu0 %v55
    %88 = vmatmul.f32.gmra.mxu0 %v63
    %v89 = vpop.f32.mrf.mxu0
    %v90 = vadd.f32 %v59, %v89
    %91 = vmatmul.f32.gmra.mxu0 %v66
    %v92 = vpop.f32.mrf.mxu0
    %v93 = vadd.f32 %v59, %v92
    %94 = vdwg.mxu0
    %v95 = vmax.f32 %v90, 0.0
    %v96 = vmax.f32 %v93, 0.0
    %v97 = vld [vmem:[%s3] sm:$0x1]
    %v99 = vperm.slane %v97, 0
    %v101 = vmul.f32 %v95, %v99
    %v102 = vmul.f32 %v96, %v99
    %103 = vadd.xlane.f32.xlu0 %v101
    %v104 = vpop.xlane.xlu0 %103
    %v105 = vsel %vm68, %v102, 0.0
    %106 = vadd.xlane.f32.xlu0 %v105
    %v107 = vpop.xlane.xlu0 %106
    %s108 = sld [smem:[#allocation2]]
    %v109 = vstv %s108
    %v110 = vadd.f32 %v104, %v109
    %v111 = vadd.f32 %v107, %v109
    %vm112 = vcmask 7168
    %113 = vst.msk [vmem:[%s5] sm:$0xff] %vm112, %v110
    %vm114 = vcmask 1024
    %115 = vst.msk [vmem:[%s5 + $0x8] sm:$0x3] %vm114, %v111
    // Predicated region
    $region30: #{mlp_forward.1} parent=1 // pred_check
      _
    $region31: #{mlp_forward.1} parent=1 // pred_check_branch
      %117 = sbr.rel (0) target = $region33
    $region32: #{mlp_forward.1} parent=1 // pred_region
      _
    $region33: #{mlp_forward.1} parent=1 // pred_fallthru
      _
    // Predicated region
    $region34: #{mlp_forward.1} parent=1 // pred_check
      _
    $region35: #{mlp_forward.1} parent=1 // pred_check_branch
      %119 = sbr.rel (0) target = $region37
    $region36: #{mlp_forward.1} parent=1 // pred_region
      _
    $region37: #{mlp_forward.1} parent=1 // pred_fallthru
      _
    %120 = vsyncpa [#allocation4], 1
    %121 = vsyncpa [#allocation6], 1

</llo_original>
